<compile_context>
chip_gen: v5e
topology: v5e:2x2
jax: 0.10.0
libtpu: 0.0.40
codegen_flags: <defaults>
</compile_context>

<pallas_src>
import functools

import jax
import jax.numpy as jnp
from jax.experimental import pallas as pl
from jax.experimental.pallas import tpu as pltpu


# ------------------------------ Pallas kernel ------------------------------

def _cct_conv_kernel(x_ref, w_ref, b_ref, o_ref, im2col_ref, *, K, pad, W, Bt):
    """Fused conv + conv_T (merged weights) for Bt batch samples.

    x_ref:      [Bt, Cin_p, HW + 2*woff] bf16, flattened (h*W+w) input with a
                woff = pad*(W+1) zero lane-halo per side (supplies the conv's
                zero border rows).
    w_ref:      [Cout, K*K*Cin_p] bf16, contraction index (kh*K+kw)*Cin_p+cin.
    b_ref:      [Cout, 1] f32.
    o_ref:      [Bt, Cout, HW] f32, lane-dense (HW multiple of 128).
    im2col_ref: VMEM scratch [K*K*Cin_p, Bt*HW] bf16.
    """
    cout, hw = o_ref.shape[1], o_ref.shape[2]
    cin_p = x_ref.shape[1]
    woff = pad * (W + 1)

    # Column (w = p % W) masks depend only on kw -> compute once, reuse for
    # every kh: K-1 broadcasted iota-compares total instead of K*(K-1).
    col = jax.lax.broadcasted_iota(jnp.int32, (1, hw), 1) % W
    zero = jnp.zeros((), dtype=x_ref.dtype)
    masks = []
    for kw in range(K):
        dw = kw - pad
        if dw < 0:
            masks.append(col >= -dw)
        elif dw > 0:
            masks.append(col < W - dw)
        else:
            masks.append(None)

    # Fill the im2col scratch: one masked, shifted lane-slice per tap.
    # Row (h) out-of-bounds taps land in the zero lane-halo; only column (w)
    # out-of-bounds needs masking.  Each tap value dies right after its store,
    # so vreg pressure stays bounded (no live accumulator across taps).
    # TODO(synk): for K=7/11 switch the kh loop to lax.fori_loop with a
    # dynamic pl.ds start to bound unrolled code size.
    for b in range(Bt):
        x = x_ref[b]                                        # [Cin_p, HWp] bf16
        for kh in range(K):
            for kw in range(K):
                dh, dw = kh - pad, kw - pad
                start = woff + dh * W + dw                  # static python int
                tap = x[:, start:start + hw]                # [Cin_p, HW]
                if masks[kw] is not None:
                    tap = jnp.where(masks[kw], tap, zero)
                r = (kh * K + kw) * cin_p
                im2col_ref[r:r + cin_p, b * hw:(b + 1) * hw] = tap

    # ONE MXU matmul: contraction K*K*Cin_p, N = Bt*HW, f32 accumulate.
    acc = jnp.dot(w_ref[...], im2col_ref[...],
                  preferred_element_type=jnp.float32)       # [Cout, Bt*HW]
    acc = acc + b_ref[...]
    for b in range(Bt):
        o_ref[b] = acc[:, b * hw:(b + 1) * hw].astype(o_ref.dtype)


# --------------------------- One-time weight prep ---------------------------

def spectral_norm_weight(w, u, bound=False):
    """SpectralNorm.compute_weight (one power iteration, fresh-u sigma)."""
    wm = w.reshape(w.shape[0], -1)
    v = wm.T @ u
    v = v / jnp.linalg.norm(v)
    u = wm @ v
    u = u / jnp.linalg.norm(u)
    sigma = u @ wm @ v
    if bound:
        return w / (sigma + 1e-6) * jnp.minimum(sigma, 1.0)
    return w / sigma


def _padding_for(kernel_size):
    return {1: 0, 3: 1, 7: 3, 11: 5}[kernel_size]


def prepare_params(key, in_channels, out_channels, kernel_size):
    """Build CCTLayer params (default config: conv + conv_T, spec_norm_reg=True,
    weight_norm=False, layer_norm=False) and pre-compute the merged
    single-matmul weight layout the kernel consumes.  Runs ONCE.
    """
    padding = _padding_for(kernel_size)
    K = kernel_size
    # Fused conv/conv_T path requires "same" spatial size on both branches
    # (the only configuration in which torch.cat along channels is valid).
    assert K - 1 - padding == padding, "fused path assumes same-padding configs"

    o_half = out_channels // 2
    k0, k1, k2, k3 = jax.random.split(key, 4)
    # spectral_norm(init=True): weight ~ N(0,1), bias zeroed, u ~ N(0,1).
    w_conv = jax.random.normal(k0, (o_half, in_channels, K, K), jnp.float32)
    u_conv = jax.random.normal(k1, (o_half,), jnp.float32)
    w_convt = jax.random.normal(k2, (in_channels, o_half, K, K), jnp.float32)
    u_convt = jax.random.normal(k3, (in_channels,), jnp.float32)
    b_conv = jnp.zeros((o_half,), jnp.float32)
    b_convt = jnp.zeros((o_half,), jnp.float32)

    # Forward-pre-hook spectral normalization (bound=False, as in CCTLayer).
    w_conv_sn = spectral_norm_weight(w_conv, u_conv, bound=False)
    w_convt_sn = spectral_norm_weight(w_convt, u_convt, bound=False)

    # stride-1 ConvTranspose2d(pad=p) == Conv2d(pad=K-1-p) with the spatially
    # flipped, channel-transposed weight; here K-1-p == p.
    w_convt_as_conv = jnp.flip(w_convt_sn, axis=(2, 3)).transpose(1, 0, 2, 3)

    # Channel order matches torch.cat([out_conv, out_conv_T], dim=1).
    w_eff = jnp.concatenate([w_conv_sn, w_convt_as_conv], axis=0)  # [Cout,Cin,K,K]
    b_eff = jnp.concatenate([b_conv, b_convt], axis=0)             # [Cout]

    # Pad input channels to a multiple of 16 (bf16 sublane packing) and build
    # the single-matmul layout [Cout, K*K*Cin_p] whose contraction index
    # (kh*K + kw)*Cin_p + cin matches the kernel's im2col row order.  bf16.
    cin_p = -(-in_channels // 16) * 16
    w_eff = jnp.pad(w_eff, ((0, 0), (0, cin_p - in_channels), (0, 0), (0, 0)))
    w_mat = jnp.transpose(w_eff, (0, 2, 3, 1)).reshape(
        out_channels, K * K * cin_p).astype(jnp.bfloat16)

    prepped = dict(w_mat=w_mat, bias=b_eff[:, None].astype(jnp.float32),
                   kernel_size=K, padding=padding, cin_p=cin_p)
    raw = dict(w_conv_sn=w_conv_sn, w_convt_sn=w_convt_sn,
               b_conv=b_conv, b_convt=b_convt)
    # TODO(synk): PyTorch's SpectralNorm hook also updates the `u` buffer in
    # place (training-time state); it does not affect this forward output.
    return prepped, raw


# ------------------------------ Forward wrapper ------------------------------

def _vmem_limit_bytes():
    """Generation-aware scoped-VMEM limit (v5e/v6e: 128 MiB parts, v7x: 64)."""
    try:
        cap = int(pltpu.get_tpu_info().vmem_capacity_bytes)
    except Exception:
        cap = 64 * 1024 * 1024        # conservative fallback (v7x-sized)
    return min(cap // 2, 100 * 1024 * 1024)


def cct_forward(params, x, *, batch_tile=None):
    """CCTLayer.forward: cat([conv(x), conv_T(x)], dim=1), NCHW in/out."""
    B, Cin, H, W = x.shape
    K, pad = params['kernel_size'], params['padding']
    w_mat, bias = params['w_mat'], params['bias']
    Cout, KKC = w_mat.shape
    Cin_p = params['cin_p']
    HW = H * W
    # Lane-dense output guard: non-multiple-of-128 HW would silently demote
    # the output stores to masked partial stores.
    assert HW % 128 == 0, "H*W must be a multiple of 128 for lane-dense stores"
    assert Cout % 8 == 0
    woff = pad * (W + 1)
    HWp = HW + 2 * woff

    # Batch tile: fold Bt samples into the matmul N dim to amortize per-step
    # overhead, but keep >=2 grid steps when possible (v7x TC parallelism).
    if batch_tile is None:
        batch_tile = 1
        while (B % (batch_tile * 2) == 0 and batch_tile * HW < 512
               and B // (batch_tile * 2) >= 2):
            batch_tile *= 2
    assert B % batch_tile == 0
    grid_len = B // batch_tile

    # Single cheap glue op: NCHW -> [B, Cin, H*W] in bf16 (halves DMA bytes and
    # the resident VMEM copy), pad channels to Cin_p and lanes by woff zeros
    # per side (gives the conv its zero border rows).
    x_flat = jnp.pad(x.astype(jnp.bfloat16).reshape(B, Cin, HW),
                     ((0, 0), (0, Cin_p - Cin), (woff, woff)))

    # TODO(synk): for much larger H*W / channel counts, add a second
    # ("arbitrary") grid axis tiling the H*W lane dim (halo of pad*(W+1)
    # lanes per tile) and single-buffer the grid-invariant weight/bias specs.
    kernel = functools.partial(_cct_conv_kernel, K=K, pad=pad, W=W,
                               Bt=batch_tile)
    out = pl.pallas_call(
        kernel,
        out_shape=jax.ShapeDtypeStruct((B, Cout, HW), jnp.float32),
        grid=(grid_len,),
        in_specs=[
            pl.BlockSpec((batch_tile, Cin_p, HWp), lambda g: (g, 0, 0)),  # x
            pl.BlockSpec((Cout, KKC), lambda g: (0, 0)),                  # weights
            pl.BlockSpec((Cout, 1), lambda g: (0, 0)),                    # bias
        ],
        out_specs=pl.BlockSpec((batch_tile, Cout, HW), lambda g: (g, 0, 0)),
        scratch_shapes=[pltpu.VMEM((KKC, batch_tile * HW), jnp.bfloat16)],
        compiler_params=pltpu.CompilerParams(
            dimension_semantics=("parallel",),       # shard batch across TCs
            vmem_limit_bytes=_vmem_limit_bytes()),
    )(x_flat, w_mat, bias)
    return out.reshape(B, Cout, H, W)                # free NCHW reshape


# ------------------------------ Reference check ------------------------------

def reference_forward(raw, x, pad, round_bf16=False):
    """Independent reference: lax conv for the conv branch; the conv_T branch
    via autodiff of the opposite-direction conv (PyTorch's own definition of
    transposed convolution).  round_bf16=True mirrors the kernel's bf16 data
    path (bf16-rounded operands, f32 accumulation)."""
    cast = ((lambda a: a.astype(jnp.bfloat16).astype(jnp.float32))
            if round_bf16 else (lambda a: a))
    dn = ('NCHW', 'OIHW', 'NCHW')
    hi = jax.lax.Precision.HIGHEST
    xr = cast(x)
    w_c = cast(raw['w_conv_sn'])
    w_t = cast(raw['w_convt_sn'])                    # [Cin, O_half, K, K]

    out_conv = jax.lax.conv_general_dilated(
        xr, w_c, (1, 1), [(pad, pad), (pad, pad)],
        dimension_numbers=dn, precision=hi)
    out_conv = out_conv + raw['b_conv'][None, :, None, None]

    def opposite_conv(z):                            # [B,O_half,H,W] -> [B,Cin,H,W]
        return jax.lax.conv_general_dilated(
            z, w_t, (1, 1), [(pad, pad), (pad, pad)],
            dimension_numbers=dn, precision=hi)

    z0 = jnp.zeros((x.shape[0], w_t.shape[1], x.shape[2], x.shape[3]),
                   jnp.float32)
    _, vjp = jax.vjp(opposite_conv, z0)
    (out_convt,) = vjp(xr)
    out_convt = out_convt + raw['b_convt'][None, :, None, None]
    return jnp.concatenate([out_conv, out_convt], axis=1)


if __name__ == "__main__":
    key = jax.random.PRNGKey(0)
    k_w, k_x = jax.random.split(key)
    B, Cin, H, W = 2, 4, 16, 16
    Cout, K = 8, 3

    prepped, raw = prepare_params(k_w, Cin, Cout, K)     # one-time weight prep
    x = jax.random.normal(k_x, (B, Cin, H, W), jnp.float32)

    fwd = jax.jit(functools.partial(cct_forward, prepped))
    out = jax.block_until_ready(fwd(x))

    assert out.shape == (B, Cout, H, W)
    assert bool(jnp.all(jnp.isfinite(out)))

    # Structural check: compare against the same bf16-rounded operands at
    # HIGHEST precision (only accumulation order differs -> tight tolerance).
    ref_bf16 = reference_forward(raw, x, prepped['padding'], round_bf16=True)
    err = float(jnp.max(jnp.abs(out - ref_bf16)))
    assert err < 1e-2, f"max abs error vs bf16-rounded reference: {err}"

    # Parity check vs the pure-f32 module semantics (loose: documented bf16
    # MXU data path).
    ref_f32 = reference_forward(raw, x, prepped['padding'], round_bf16=False)
    err32 = float(jnp.max(jnp.abs(out - ref_f32)))
    assert err32 < 1e-1, f"max abs error vs f32 reference: {err32}"
    print("KERNEL_OK")
</pallas_src>

<mosaic_0001>
module attributes {stable_mosaic.version = 11 : i64} {
  func.func @_cct_conv_kernel(%arg0: i32, %arg1: memref<1x16x290xbf16, #tpu.memory_space<vmem>>, %arg2: memref<8x144xbf16, #tpu.memory_space<vmem>>, %arg3: memref<8x1xf32, #tpu.memory_space<vmem>>, %arg4: memref<1x8x256xf32, #tpu.memory_space<vmem>>, %arg5: memref<144x256xbf16, #tpu.memory_space<vmem>>) attributes {dimension_semantics = [#tpu.dimension_semantics<parallel>], iteration_bounds = array<i64: 2>, scalar_prefetch = 0 : i64, scratch_operands = 1 : i64, tpu.core_type = #tpu.core_type<tc>, window_params = [{transform_indices = @transform_0, window_bounds = array<i64: 1, 16, 290>}, {pipeline_mode = #tpu.pipeline_mode<synchronous>, transform_indices = @transform_1, window_bounds = array<i64: 8, 144>}, {pipeline_mode = #tpu.pipeline_mode<synchronous>, transform_indices = @transform_2, window_bounds = array<i64: 8, 1>}, {transform_indices = @transform_3, window_bounds = array<i64: 1, 8, 256>}]} {
    %0 = tpu.iota {dimensions = array<i32: 1>} : vector<1x256xi32>
    %c16_i32 = arith.constant 16 : i32
    %c0_i32 = arith.constant 0 : i32
    %1 = arith.cmpi eq, %c16_i32, %c0_i32 : i32
    %c1_i32 = arith.constant 1 : i32
    %2 = arith.select %1, %c1_i32, %c16_i32 : i32
    %3 = vector.broadcast %2 : i32 to vector<1x256xi32>
    %4 = arith.remsi %0, %3 : vector<1x256xi32>
    %c0_i32_0 = arith.constant 0 : i32
    %5 = vector.broadcast %c0_i32_0 : i32 to vector<1x256xi32>
    %6 = arith.cmpi ne, %4, %5 : vector<1x256xi32>
    %c0_i32_1 = arith.constant 0 : i32
    %7 = vector.broadcast %c0_i32_1 : i32 to vector<1x256xi32>
    %8 = arith.cmpi slt, %4, %7 : vector<1x256xi32>
    %c0_i32_2 = arith.constant 0 : i32
    %9 = arith.cmpi slt, %2, %c0_i32_2 : i32
    %10 = vector.broadcast %9 : i1 to vector<1x256xi1>
    %11 = vector.broadcast %10 : vector<1x256xi1> to vector<1x256xi1>
    %12 = arith.xori %8, %11 : vector<1x256xi1>
    %13 = arith.andi %12, %6 : vector<1x256xi1>
    %14 = vector.broadcast %2 : i32 to vector<1x256xi32>
    %15 = arith.addi %4, %14 : vector<1x256xi32>
    %16 = arith.select %13, %15, %4 : vector<1x256xi1>, vector<1x256xi32>
    %c1_i32_3 = arith.constant 1 : i32
    %17 = vector.broadcast %c1_i32_3 : i32 to vector<1x256xi32>
    %18 = arith.cmpi sge, %16, %17 : vector<1x256xi32>
    %c15_i32 = arith.constant 15 : i32
    %19 = vector.broadcast %c15_i32 : i32 to vector<1x256xi32>
    %20 = arith.cmpi slt, %16, %19 : vector<1x256xi32>
    %c0 = arith.constant 0 : index
    %c0_4 = arith.constant 0 : index
    %c0_5 = arith.constant 0 : index
    %21 = vector.load %arg1[%c0, %c0_4, %c0_5] : memref<1x16x290xbf16, #tpu.memory_space<vmem>>, vector<1x16x290xbf16>
    %22 = vector.shape_cast %21 : vector<1x16x290xbf16> to vector<16x290xbf16>
    %23 = vector.extract_strided_slice %22 {offsets = [0, 0], sizes = [16, 256], strides = [1, 1]} : vector<16x290xbf16> to vector<16x256xbf16>
    %cst = arith.constant 0.000000e+00 : bf16
    %24 = vector.shape_cast %18 : vector<1x256xi1> to vector<1x256xi1>
    %25 = vector.broadcast %24 : vector<1x256xi1> to vector<16x256xi1>
    %26 = vector.broadcast %cst : bf16 to vector<16x256xbf16>
    %27 = arith.select %25, %23, %26 : vector<16x256xi1>, vector<16x256xbf16>
    %c0_6 = arith.constant 0 : index
    %c0_7 = arith.constant 0 : index
    %28 = vector.load %arg5[%c0_6, %c0_7] : memref<144x256xbf16, #tpu.memory_space<vmem>>, vector<16x256xbf16>
    tpu.vector_store %arg5[%c0_6, %c0_7], %27 {strides = array<i32>} : memref<144x256xbf16, #tpu.memory_space<vmem>>, vector<16x256xbf16>,
    %29 = vector.extract_strided_slice %22 {offsets = [0, 1], sizes = [16, 256], strides = [1, 1]} : vector<16x290xbf16> to vector<16x256xbf16>
    %c16 = arith.constant 16 : index
    %c0_8 = arith.constant 0 : index
    %30 = vector.load %arg5[%c16, %c0_8] : memref<144x256xbf16, #tpu.memory_space<vmem>>, vector<16x256xbf16>
    tpu.vector_store %arg5[%c16, %c0_8], %29 {strides = array<i32>} : memref<144x256xbf16, #tpu.memory_space<vmem>>, vector<16x256xbf16>,
    %31 = vector.extract_strided_slice %22 {offsets = [0, 2], sizes = [16, 256], strides = [1, 1]} : vector<16x290xbf16> to vector<16x256xbf16>
    %cst_9 = arith.constant 0.000000e+00 : bf16
    %32 = vector.shape_cast %20 : vector<1x256xi1> to vector<1x256xi1>
    %33 = vector.broadcast %32 : vector<1x256xi1> to vector<16x256xi1>
    %34 = vector.broadcast %cst_9 : bf16 to vector<16x256xbf16>
    %35 = arith.select %33, %31, %34 : vector<16x256xi1>, vector<16x256xbf16>
    %c32 = arith.constant 32 : index
    %c0_10 = arith.constant 0 : index
    %36 = vector.load %arg5[%c32, %c0_10] : memref<144x256xbf16, #tpu.memory_space<vmem>>, vector<16x256xbf16>
    tpu.vector_store %arg5[%c32, %c0_10], %35 {strides = array<i32>} : memref<144x256xbf16, #tpu.memory_space<vmem>>, vector<16x256xbf16>,
    %37 = vector.extract_strided_slice %22 {offsets = [0, 16], sizes = [16, 256], strides = [1, 1]} : vector<16x290xbf16> to vector<16x256xbf16>
    %cst_11 = arith.constant 0.000000e+00 : bf16
    %38 = vector.shape_cast %18 : vector<1x256xi1> to vector<1x256xi1>
    %39 = vector.broadcast %38 : vector<1x256xi1> to vector<16x256xi1>
    %40 = vector.broadcast %cst_11 : bf16 to vector<16x256xbf16>
    %41 = arith.select %39, %37, %40 : vector<16x256xi1>, vector<16x256xbf16>
    %c48 = arith.constant 48 : index
    %c0_12 = arith.constant 0 : index
    %42 = vector.load %arg5[%c48, %c0_12] : memref<144x256xbf16, #tpu.memory_space<vmem>>, vector<16x256xbf16>
    tpu.vector_store %arg5[%c48, %c0_12], %41 {strides = array<i32>} : memref<144x256xbf16, #tpu.memory_space<vmem>>, vector<16x256xbf16>,
    %43 = vector.extract_strided_slice %22 {offsets = [0, 17], sizes = [16, 256], strides = [1, 1]} : vector<16x290xbf16> to vector<16x256xbf16>
    %c64 = arith.constant 64 : index
    %c0_13 = arith.constant 0 : index
    %44 = vector.load %arg5[%c64, %c0_13] : memref<144x256xbf16, #tpu.memory_space<vmem>>, vector<16x256xbf16>
    tpu.vector_store %arg5[%c64, %c0_13], %43 {strides = array<i32>} : memref<144x256xbf16, #tpu.memory_space<vmem>>, vector<16x256xbf16>,
    %45 = vector.extract_strided_slice %22 {offsets = [0, 18], sizes = [16, 256], strides = [1, 1]} : vector<16x290xbf16> to vector<16x256xbf16>
    %cst_14 = arith.constant 0.000000e+00 : bf16
    %46 = vector.shape_cast %20 : vector<1x256xi1> to vector<1x256xi1>
    %47 = vector.broadcast %46 : vector<1x256xi1> to vector<16x256xi1>
    %48 = vector.broadcast %cst_14 : bf16 to vector<16x256xbf16>
    %49 = arith.select %47, %45, %48 : vector<16x256xi1>, vector<16x256xbf16>
    %c80 = arith.constant 80 : index
    %c0_15 = arith.constant 0 : index
    %50 = vector.load %arg5[%c80, %c0_15] : memref<144x256xbf16, #tpu.memory_space<vmem>>, vector<16x256xbf16>
    tpu.vector_store %arg5[%c80, %c0_15], %49 {strides = array<i32>} : memref<144x256xbf16, #tpu.memory_space<vmem>>, vector<16x256xbf16>,
    %51 = vector.extract_strided_slice %22 {offsets = [0, 32], sizes = [16, 256], strides = [1, 1]} : vector<16x290xbf16> to vector<16x256xbf16>
    %cst_16 = arith.constant 0.000000e+00 : bf16
    %52 = vector.shape_cast %18 : vector<1x256xi1> to vector<1x256xi1>
    %53 = vector.broadcast %52 : vector<1x256xi1> to vector<16x256xi1>
    %54 = vector.broadcast %cst_16 : bf16 to vector<16x256xbf16>
    %55 = arith.select %53, %51, %54 : vector<16x256xi1>, vector<16x256xbf16>
    %c96 = arith.constant 96 : index
    %c0_17 = arith.constant 0 : index
    %56 = vector.load %arg5[%c96, %c0_17] : memref<144x256xbf16, #tpu.memory_space<vmem>>, vector<16x256xbf16>
    tpu.vector_store %arg5[%c96, %c0_17], %55 {strides = array<i32>} : memref<144x256xbf16, #tpu.memory_space<vmem>>, vector<16x256xbf16>,
    %57 = vector.extract_strided_slice %22 {offsets = [0, 33], sizes = [16, 256], strides = [1, 1]} : vector<16x290xbf16> to vector<16x256xbf16>
    %c112 = arith.constant 112 : index
    %c0_18 = arith.constant 0 : index
    %58 = vector.load %arg5[%c112, %c0_18] : memref<144x256xbf16, #tpu.memory_space<vmem>>, vector<16x256xbf16>
    tpu.vector_store %arg5[%c112, %c0_18], %57 {strides = array<i32>} : memref<144x256xbf16, #tpu.memory_space<vmem>>, vector<16x256xbf16>,
    %59 = vector.extract_strided_slice %22 {offsets = [0, 34], sizes = [16, 256], strides = [1, 1]} : vector<16x290xbf16> to vector<16x256xbf16>
    %cst_19 = arith.constant 0.000000e+00 : bf16
    %60 = vector.shape_cast %20 : vector<1x256xi1> to vector<1x256xi1>
    %61 = vector.broadcast %60 : vector<1x256xi1> to vector<16x256xi1>
    %62 = vector.broadcast %cst_19 : bf16 to vector<16x256xbf16>
    %63 = arith.select %61, %59, %62 : vector<16x256xi1>, vector<16x256xbf16>
    %c128 = arith.constant 128 : index
    %c0_20 = arith.constant 0 : index
    %64 = vector.load %arg5[%c128, %c0_20] : memref<144x256xbf16, #tpu.memory_space<vmem>>, vector<16x256xbf16>
    tpu.vector_store %arg5[%c128, %c0_20], %63 {strides = array<i32>} : memref<144x256xbf16, #tpu.memory_space<vmem>>, vector<16x256xbf16>,
    %c0_21 = arith.constant 0 : index
    %c0_22 = arith.constant 0 : index
    %65 = vector.load %arg2[%c0_21, %c0_22] : memref<8x144xbf16, #tpu.memory_space<vmem>>, vector<8x144xbf16>
    %c0_23 = arith.constant 0 : index
    %c0_24 = arith.constant 0 : index
    %66 = vector.load %arg5[%c0_23, %c0_24] : memref<144x256xbf16, #tpu.memory_space<vmem>>, vector<144x256xbf16>
    %cst_25 = arith.constant dense<0.000000e+00> : vector<8x256xf32>
    %67 = tpu.matmul %65, %66, %cst_25 {dimension_numbers = #tpu.dot_dimension_numbers<[1], [0], [0], [1], [0, 0, 1, 1], [], []>} : vector<8x144xbf16>, vector<144x256xbf16>, vector<8x256xf32> -> vector<8x256xf32>
    %c0_26 = arith.constant 0 : index
    %c0_27 = arith.constant 0 : index
    %68 = vector.load %arg3[%c0_26, %c0_27] : memref<8x1xf32, #tpu.memory_space<vmem>>, vector<8x1xf32>
    %69 = vector.broadcast %68 : vector<8x1xf32> to vector<8x256xf32>
    %70 = arith.addf %67, %69 : vector<8x256xf32>
    %c0_28 = arith.constant 0 : index
    %c0_29 = arith.constant 0 : index
    %c0_30 = arith.constant 0 : index
    %71 = vector.load %arg4[%c0_28, %c0_29, %c0_30] : memref<1x8x256xf32, #tpu.memory_space<vmem>>, vector<1x8x256xf32>
    %72 = vector.shape_cast %71 : vector<1x8x256xf32> to vector<8x256xf32>
    %73 = vector.shape_cast %70 : vector<8x256xf32> to vector<1x8x256xf32>
    tpu.vector_store %arg4[%c0_28, %c0_29, %c0_30], %73 {strides = array<i32>} : memref<1x8x256xf32, #tpu.memory_space<vmem>>, vector<1x8x256xf32>,
    return
  }
  func.func @transform_0(%arg0: i32) -> (i32, i32, i32) {
    %c0_i32 = arith.constant 0 : i32
    %c0_i32_0 = arith.constant 0 : i32
    %c0_i32_1 = arith.constant 0 : i32
    return %arg0, %c0_i32, %c0_i32_0 : i32, i32, i32
  }
  func.func @transform_1(%arg0: i32) -> (i32, i32) {
    %c0_i32 = arith.constant 0 : i32
    %c0_i32_0 = arith.constant 0 : i32
    %c0_i32_1 = arith.constant 0 : i32
    return %c0_i32, %c0_i32_0 : i32, i32
  }
  func.func @transform_2(%arg0: i32) -> (i32, i32) {
    %c0_i32 = arith.constant 0 : i32
    %c0_i32_0 = arith.constant 0 : i32
    %c0_i32_1 = arith.constant 0 : i32
    return %c0_i32, %c0_i32_0 : i32, i32
  }
  func.func @transform_3(%arg0: i32) -> (i32, i32, i32) {
    %c0_i32 = arith.constant 0 : i32
    %c0_i32_0 = arith.constant 0 : i32
    %c0_i32_1 = arith.constant 0 : i32
    return %arg0, %c0_i32, %c0_i32_0 : i32, i32, i32
  }
}

</mosaic_0001>

<llo_original>
// kernel: cct_forward.1
$region0: #{cct_forward.1}
  #allocation0 [shape = 'u32[]', space=smem, size = 0x4, offset = 0x4, fixed_abs, tag = 'smem constant byte address 0x4 - core index']
  #allocation1 [shape = 'u32[72,128]{1,0:T(1,128)}', space=vmem, size = 0x9000, scoped, tag = 'internal scratch']
  #allocation2 [shape = 'bf16[144,256]{1,0:T(8,128)(2,1)}', space=vmem, size = 0x12000, scoped, tag = 'scratch operand']
  %s0 = inlined_call_operand.vmem [shape: bf16[2,16,290], index: 0, kind: input, shape index: {}]
  %s1 = inlined_call_operand.vmem [shape: bf16[8,144], index: 1, kind: input, shape index: {}]
  %s2 = inlined_call_operand.vmem [shape: f32[8,1], index: 2, kind: input, shape index: {}]
  %s3 = inlined_call_operand.vmem [shape: f32[2,8,256], index: 3, kind: output, shape index: {}]
  %s4 = sld [smem:[#allocation0]]
  $region45: #{cct_forward.1} parent=0
    _
  %s6 = ssub.s32 1, %s4
  %s7 = scalar_select 0, %s6, %s4
  loop: start=0, step=1, limit=4
  $region2: #{cct_forward.1} parent=0 // loop_pre_header
    _
  $region3: #{cct_forward.1} parent=0 // loop_header
    %s9 = sphi 0, %s13
    %p10 = scmp.ge.s32.totalorder %s9, 4
    %s19 = sphi 0, %s21
    %s22 = sphi 0, %s19
    %s23 = sphi 0, %s22
    %s39 = sphi 0, %s23
    %s43 = sphi 0, %s43
    %s45 = sphi 0, %s43
    %s46 = sphi 0, %s45
    %s60 = sphi 0, %s46
    %s64 = sphi 0, %s64
    %s66 = sphi 0, %s64
    %s67 = sphi 0, %s66
    %s81 = sphi 0, %s67
    %s87 = sphi 0, %s89
    %s90 = sphi 0, %s87
    %s91 = sphi 0, %s90
    %s107 = sphi 0, %s91
  $region4: #{cct_forward.1} parent=0 // loop_header_branch
    %12 = sbr.rel (%p10) target = $region8
  $region5: #{cct_forward.1} parent=0 // loop_body
    %s14 = ssub.s32 %s9, 1
    %s15 = ssub.s32 %s9, 2
    %s16 = sadd.s32 %s9, 1
    %s17 = ssub.s32 %s9, %s16
    %p18 = scmp.eq.s32.totalorder %s17, 0
    %s20 = sadd.s32 %s19, 1
    %s21 = scalar_select %p18, %s19, %s20
    %p24 = pneg %p18
    %p25 = scmp.eq.s32.totalorder %s9, 1
    %p26 = por %p24, %p25
    %p27 = scmp.ne.s32.totalorder %s19, %s22
    %p28 = scmp.eq.s32.totalorder %s9, 0
    %p29 = por %p27, %p28
    %p30 = scmp.ne.s32.totalorder %s19, %s22
    %p31 = scmp.eq.s32.totalorder %s14, 1
    %p32 = por %p30, %p31
    %p33 = scmp.ne.s32.totalorder %s22, %s23
    %p34 = scmp.eq.s32.totalorder %s14, 0
    %p35 = por %p33, %p34
    %p36 = scmp.ne.s32.totalorder %s22, %s23
    %p37 = scmp.eq.s32.totalorder %s15, 1
    %p38 = por %p36, %p37
    %p40 = scmp.ne.s32.totalorder %s23, %s39
    %p41 = scmp.eq.s32.totalorder %s15, 0
    %p42 = por %p40, %p41
    %s44 = sadd.s32 %s43, 1
    %p47 = scmp.eq.s32.totalorder %s9, 1
    %p48 = scmp.ne.s32.totalorder %s43, %s45
    %p49 = scmp.eq.s32.totalorder %s9, 0
    %p50 = por %p48, %p49
    %p51 = scmp.ne.s32.totalorder %s43, %s45
    %p52 = scmp.eq.s32.totalorder %s14, 1
    %p53 = por %p51, %p52
    %p54 = scmp.ne.s32.totalorder %s45, %s46
    %p55 = scmp.eq.s32.totalorder %s14, 0
    %p56 = por %p54, %p55
    %p57 = scmp.ne.s32.totalorder %s45, %s46
    %p58 = scmp.eq.s32.totalorder %s15, 1
    %p59 = por %p57, %p58
    %p61 = scmp.ne.s32.totalorder %s46, %s60
    %p62 = scmp.eq.s32.totalorder %s15, 0
    %p63 = por %p61, %p62
    %s65 = sadd.s32 %s64, 1
    %p68 = scmp.eq.s32.totalorder %s9, 1
    %p69 = scmp.ne.s32.totalorder %s64, %s66
    %p70 = scmp.eq.s32.totalorder %s9, 0
    %p71 = por %p69, %p70
    %p72 = scmp.ne.s32.totalorder %s64, %s66
    %p73 = scmp.eq.s32.totalorder %s14, 1
    %p74 = por %p72, %p73
    %p75 = scmp.ne.s32.totalorder %s66, %s67
    %p76 = scmp.eq.s32.totalorder %s14, 0
    %p77 = por %p75, %p76
    %p78 = scmp.ne.s32.totalorder %s66, %s67
    %p79 = scmp.eq.s32.totalorder %s15, 1
    %p80 = por %p78, %p79
    %p82 = scmp.ne.s32.totalorder %s67, %s81
    %p83 = scmp.eq.s32.totalorder %s15, 0
    %p84 = por %p82, %p83
    %s85 = ssub.s32 %s9, %s16
    %p86 = scmp.eq.s32.totalorder %s85, 0
    %s88 = sadd.s32 %s87, 1
    %s89 = scalar_select %p86, %s87, %s88
    %p92 = pneg %p86
    %p93 = scmp.eq.s32.totalorder %s9, 1
    %p94 = por %p92, %p93
    %p95 = scmp.ne.s32.totalorder %s87, %s90
    %p96 = scmp.eq.s32.totalorder %s9, 0
    %p97 = por %p95, %p96
    %p98 = scmp.ne.s32.totalorder %s87, %s90
    %p99 = scmp.eq.s32.totalorder %s14, 1
    %p100 = por %p98, %p99
    %p101 = scmp.ne.s32.totalorder %s90, %s91
    %p102 = scmp.eq.s32.totalorder %s14, 0
    %p103 = por %p101, %p102
    %p104 = scmp.ne.s32.totalorder %s90, %s91
    %p105 = scmp.eq.s32.totalorder %s15, 1
    %p106 = por %p104, %p105
    %p108 = scmp.ne.s32.totalorder %s91, %s107
    %p109 = scmp.eq.s32.totalorder %s15, 0
    %p110 = por %p108, %p109
    %p111 = scmp.le.s32.totalorder 1, %s9
    %p112 = scmp.lt.s32.totalorder %s9, 3
    %p113 = pnand %p111, %p112
    %p114 = pneg %p113
    // Predicated region
    $region9: #{cct_forward.1} parent=5 // pred_check
      _
    $region10: #{cct_forward.1} parent=5 // pred_check_branch
      %116 = sbr.rel (%p113) target = $region12
    $region11: #{cct_forward.1} parent=5 // pred_region
      %s117 = ssub.s32 %s9, 1
      // Predicated region
      $region13: #{cct_forward.1} parent=11 // pred_check
        %p118 = pneg %p56
      $region14: #{cct_forward.1} parent=11 // pred_check_branch
        %120 = sbr.rel (%p118) target = $region16
      $region15: #{cct_forward.1} parent=11 // pred_region
        _
      $region16: #{cct_forward.1} parent=11 // pred_fallthru
        _
      // Predicated region
      $region17: #{cct_forward.1} parent=11 // pred_check
        %p121 = pneg %p77
      $region18: #{cct_forward.1} parent=11 // pred_check_branch
        %123 = sbr.rel (%p121) target = $region20
      $region19: #{cct_forward.1} parent=11 // pred_region
        _
      $region20: #{cct_forward.1} parent=11 // pred_fallthru
        _
    $region12: #{cct_forward.1} parent=5 // pred_fallthru
      _
    %p124 = scmp.lt.s32.totalorder %s9, 2
    // Predicated region
    $region21: #{cct_forward.1} parent=5 // pred_check
      %p125 = pneg %p124
    $region22: #{cct_forward.1} parent=5 // pred_check_branch
      %127 = sbr.rel (%p125) target = $region24
    $region23: #{cct_forward.1} parent=5 // pred_region
      // Predicated region
      $region25: #{cct_forward.1} parent=23 // pred_check
        %p128 = pneg %p29
      $region26: #{cct_forward.1} parent=23 // pred_check_branch
        %130 = sbr.rel (%p128) target = $region28
      $region27: #{cct_forward.1} parent=23 // pred_region
        %p131 = scmp.lt.s32.totalorder %s9, 1
        %s132 = scalar_select %p131, %s9, 1
        %s133 = smul.addr %s132, 6
        %s134 = smul.addr %s133, 4
        %s135 = scalar_lea.vmem %s0, %s134
      $region28: #{cct_forward.1} parent=23 // pred_fallthru
        _
    $region24: #{cct_forward.1} parent=5 // pred_fallthru
      _
    %p136 = scmp.le.s32.totalorder 1, %s9
    %p137 = scmp.lt.s32.totalorder %s9, 3
    %p138 = pnand %p136, %p137
    %p139 = pneg %p138
    // Predicated region
    $region29: #{cct_forward.1} parent=5 // pred_check
      _
    $region30: #{cct_forward.1} parent=5 // pred_check_branch
      %141 = sbr.rel (%p138) target = $region32
    $region31: #{cct_forward.1} parent=5 // pred_region
      %s142 = ssub.s32 %s9, 1
      %p143 = scmp.lt.s32.totalorder %s14, 1
      %s144 = scalar_select %p143, %s14, 1
      %s145 = smul.addr %s144, 6
      %s146 = smul.addr %s145, 4
      %s147 = scalar_lea.vmem %s0, %s146
      %p148 = pneg %p35
      %p149 = pneg %p32
      %p150 = pneg %p56
      %p151 = pneg %p53
      %p152 = pneg %p77
      %p153 = pneg %p74
      %p154 = pneg %p103
      %p155 = pneg %p100
      %p156 = scmp.lt.s32.totalorder %s14, 1
      %s157 = scalar_select %p156, %s14, 1
      %s158 = smul.addr %s157, 2
      %s159 = smul.addr %s158, 8
      %s160 = scalar_lea.vmem %s3, %s159
      %p161 = scmp.lt.s32.totalorder %s14, 1
      %s162 = scalar_select %p161, %s14, 1
      %s163 = smul.addr %s162, 6
      %s164 = smul.addr %s163, 4
      %s165 = scalar_lea.vmem %s0, %s164
      %p166 = scmp.lt.s32.totalorder %s14, 1
      %s167 = scalar_select %p166, %s14, 1
      %s168 = smul.addr %s167, 2
      %s169 = smul.addr %s168, 8
      %s170 = scalar_lea.vmem %s3, %s169
      %v174 = vlaneseq
      %v175 = vand.u32 %v174, 127
      %v176 = vadd.s32 %v175, 128
      %vm177 = vcmp.lt.s32.totalorder %v175, 0
      %v178 = vsub.s32 0, %v175
      %v179 = vsel %vm177, %v178, %v175
      %v180 = vshrl.u32 %v179, 4
      %v181 = vand.u32 %v179, 15
      %v182 = vsub.s32 0, %v181
      %v183 = vsel %vm177, %v182, %v181
      %vm184 = vcmp.lt.s32.totalorder %v176, 0
      %v185 = vsub.s32 0, %v176
      %v186 = vsel %vm184, %v185, %v176
      %v187 = vshrl.u32 %v186, 4
      %v188 = vand.u32 %v186, 15
      %v189 = vsub.s32 0, %v188
      %v190 = vsel %vm184, %v189, %v188
      %vm191 = vcmp.ne.s32.totalorder %v183, 0
      %vm192 = vcmp.ne.s32.totalorder %v190, 0
      %vm193 = vcmp.lt.s32.totalorder %v183, 0
      %vm194 = vcmp.lt.s32.totalorder %v190, 0
      %vm195 = vmand %vm193, %vm191
      %vm196 = vmand %vm194, %vm192
      %v197 = vadd.s32 %v183, 16
      %v198 = vadd.s32 %v190, 16
      %v199 = vsel %vm195, %v197, %v183
      %v200 = vsel %vm196, %v198, %v190
      %vm201 = vcmp.ge.s32.totalorder %v199, 1
      %vm202 = vcmp.ge.s32.totalorder %v200, 1
      %vm203 = vcmp.lt.s32.totalorder %v199, 15
      %vm204 = vcmp.lt.s32.totalorder %v200, 15
      %v205 = vld [vmem:[%s165] sm:$0xff]
      %v206 = vld [vmem:[%s165 + $0x8] sm:$0xf]
      %v207 = vld [vmem:[%s165 + $0xc] sm:$0xff]
      %v208 = vld [vmem:[%s165 + $0x14] sm:$0xf]
      %v209 = vsel %vm201, 1, 0
      %v210 = vsel %vm202, 1, 0
      %vm211 = vcmp.eq.s32.totalorder %v209, 1
      %vm212 = vcmp.eq.s32.totalorder %v210, 1
      %vm213 = vmpackc.low %vm212, %vm211
      %v214 = vsel %vm213, %v205, 0
      %v215 = vsel %vm213, %v207, 0
      %216 = vst [vmem:[#allocation2] sm:$0xff] %v214
      %217 = vst [vmem:[#allocation2 + $0x8] sm:$0xff] %v215
      %222 = vrot.lane.b32.xlu0 %v205, 127
      %v223 = vpop.permute.xlu0 %222
      %224 = vrot.lane.b32.xlu0 %v206, 127
      %v225 = vpop.permute.xlu0 %224
      %226 = vrot.lane.b32.xlu0 %v207, 127
      %v227 = vpop.permute.xlu0 %226
      %228 = vrot.lane.b32.xlu0 %v208, 127
      %v229 = vpop.permute.xlu0 %228
      %v230 = vrot.slane %v223, 4
      %v231 = vrot.slane %v225, 4
      %v232 = vrot.slane %v227, 4
      %v233 = vrot.slane %v229, 4
      %vm234 = vcmask 1043456
      %v235 = vsel %vm234, %v230, %v231
      %vm236 = vcmask 1039360
      %v237 = vsel %vm236, %v223, %v235
      %v238 = vsel %vm234, %v232, %v233
      %v239 = vsel %vm236, %v227, %v238
      %242 = vst [vmem:[#allocation2 + $0x10] sm:$0xff] %v237
      %243 = vst [vmem:[#allocation2 + $0x18] sm:$0xff] %v239
      %v244 = vsel %vm203, 1, 0
      %v245 = vsel %vm204, 1, 0
      %vm246 = vcmp.eq.s32.totalorder %v244, 1
      %vm247 = vcmp.eq.s32.totalorder %v245, 1
      %vm248 = vmpackc.low %vm247, %vm246
      %v249 = vsel %vm248, 65537, 0
      %250 = vrot.lane.b32.xlu0 %v249, 2
      %v251 = vpop.permute.xlu0 %250
      %v252 = vrot.slane %v251, 4
      %vm253 = vcmask 15360
      %v254 = vsel %vm253, %v252, %v251
      %v255 = vunpack.c.l.b16 %v254
      %v256 = vunpack.c.h.b16 %v254
      %v257 = vunpack.c.l.b16 0
      %v258 = vunpack.c.h.b16 0
      %vm259 = vcmp.ne.s32.totalorder %v255, %v257
      %vm260 = vcmp.ne.s32.totalorder %v256, %v258
      %vm261 = vmpackc.low %vm260, %vm259
      %v262 = vunpack.c.l.b16 %v252
      %v263 = vunpack.c.h.b16 %v252
      %v264 = vunpack.c.l.b16 0
      %v265 = vunpack.c.h.b16 0
      %vm266 = vcmp.ne.s32.totalorder %v262, %v264
      %vm267 = vcmp.ne.s32.totalorder %v263, %v265
      %vm268 = vmpackc.low %vm267, %vm266
      %v269 = vsel %vm261, %v205, 0
      %v270 = vsel %vm268, %v206, 0
      %v271 = vsel %vm261, %v207, 0
      %v272 = vsel %vm268, %v208, 0
      %277 = vrot.lane.b32.xlu0 %v269, 126
      %v278 = vpop.permute.xlu0 %277
      %279 = vrot.lane.b32.xlu0 %v270, 126
      %v280 = vpop.permute.xlu0 %279
      %281 = vrot.lane.b32.xlu0 %v271, 126
      %v282 = vpop.permute.xlu0 %281
      %283 = vrot.lane.b32.xlu0 %v272, 126
      %v284 = vpop.permute.xlu0 %283
      %v285 = vrot.slane %v278, 4
      %v286 = vrot.slane %v280, 4
      %v287 = vrot.slane %v282, 4
      %v288 = vrot.slane %v284, 4
      %v289 = vsel %vm234, %v285, %v286
      %vm290 = vcmask 1031168
      %v291 = vsel %vm290, %v278, %v289
      %v292 = vsel %vm234, %v287, %v288
      %v293 = vsel %vm290, %v282, %v292
      %296 = vst [vmem:[#allocation2 + $0x20] sm:$0xff] %v291
      %297 = vst [vmem:[#allocation2 + $0x28] sm:$0xff] %v293
      %v298 = vsel %vm213, 65537, 0
      %299 = vrot.lane.b32.xlu0 %v298, 16
      %v300 = vpop.permute.xlu0 %299
      %v301 = vrot.slane %v300, 4
      %vm302 = vcmask 130048
      %v303 = vsel %vm302, %v301, %v300
      %v304 = vunpack.c.l.b16 %v303
      %v305 = vunpack.c.h.b16 %v303
      %v306 = vunpack.c.l.b16 0
      %v307 = vunpack.c.h.b16 0
      %vm308 = vcmp.ne.s32.totalorder %v304, %v306
      %vm309 = vcmp.ne.s32.totalorder %v305, %v307
      %vm310 = vmpackc.low %vm309, %vm308
      %v311 = vunpack.c.l.b16 %v301
      %v312 = vunpack.c.h.b16 %v301
      %v313 = vunpack.c.l.b16 0
      %v314 = vunpack.c.h.b16 0
      %vm315 = vcmp.ne.s32.totalorder %v311, %v313
      %vm316 = vcmp.ne.s32.totalorder %v312, %v314
      %vm317 = vmpackc.low %vm316, %vm315
      %v318 = vsel %vm310, %v205, 0
      %v319 = vsel %vm317, %v206, 0
      %v320 = vsel %vm310, %v207, 0
      %v321 = vsel %vm317, %v208, 0
      %326 = vrot.lane.b32.xlu0 %v318, 112
      %v327 = vpop.permute.xlu0 %326
      %328 = vrot.lane.b32.xlu0 %v319, 112
      %v329 = vpop.permute.xlu0 %328
      %330 = vrot.lane.b32.xlu0 %v320, 112
      %v331 = vpop.permute.xlu0 %330
      %332 = vrot.lane.b32.xlu0 %v321, 112
      %v333 = vpop.permute.xlu0 %332
      %v334 = vrot.slane %v327, 4
      %v335 = vrot.slane %v329, 4
      %v336 = vrot.slane %v331, 4
      %v337 = vrot.slane %v333, 4
      %v338 = vsel %vm234, %v334, %v335
      %vm339 = vcmask 916480
      %v340 = vsel %vm339, %v327, %v338
      %v341 = vsel %vm234, %v336, %v337
      %v342 = vsel %vm339, %v331, %v341
      %345 = vst [vmem:[#allocation2 + $0x30] sm:$0xff] %v340
      %346 = vst [vmem:[#allocation2 + $0x38] sm:$0xff] %v342
      %347 = vrot.lane.b32.xlu0 %v205, 111
      %v348 = vpop.permute.xlu0 %347
      %349 = vrot.lane.b32.xlu0 %v206, 111
      %v350 = vpop.permute.xlu0 %349
      %351 = vrot.lane.b32.xlu0 %v207, 111
      %v352 = vpop.permute.xlu0 %351
      %353 = vrot.lane.b32.xlu0 %v208, 111
      %v354 = vpop.permute.xlu0 %353
      %v355 = vrot.slane %v348, 4
      %v356 = vrot.slane %v350, 4
      %v357 = vrot.slane %v352, 4
      %v358 = vrot.slane %v354, 4
      %v359 = vsel %vm234, %v355, %v356
      %vm360 = vcmask 908288
      %v361 = vsel %vm360, %v348, %v359
      %v362 = vsel %vm234, %v357, %v358
      %v363 = vsel %vm360, %v352, %v362
      %366 = vst [vmem:[#allocation2 + $0x40] sm:$0xff] %v361
      %367 = vst [vmem:[#allocation2 + $0x48] sm:$0xff] %v363
      %368 = vrot.lane.b32.xlu0 %v249, 18
      %v369 = vpop.permute.xlu0 %368
      %v370 = vrot.slane %v369, 4
      %vm371 = vcmask 146432
      %v372 = vsel %vm371, %v370, %v369
      %v373 = vunpack.c.l.b16 %v372
      %v374 = vunpack.c.h.b16 %v372
      %v375 = vunpack.c.l.b16 0
      %v376 = vunpack.c.h.b16 0
      %vm377 = vcmp.ne.s32.totalorder %v373, %v375
      %vm378 = vcmp.ne.s32.totalorder %v374, %v376
      %vm379 = vmpackc.low %vm378, %vm377
      %v380 = vunpack.c.l.b16 %v370
      %v381 = vunpack.c.h.b16 %v370
      %v382 = vunpack.c.l.b16 0
      %v383 = vunpack.c.h.b16 0
      %vm384 = vcmp.ne.s32.totalorder %v380, %v382
      %vm385 = vcmp.ne.s32.totalorder %v381, %v383
      %vm386 = vmpackc.low %vm385, %vm384
      %v387 = vsel %vm379, %v205, 0
      %v388 = vsel %vm386, %v206, 0
      %v389 = vsel %vm379, %v207, 0
      %v390 = vsel %vm386, %v208, 0
      %395 = vrot.lane.b32.xlu0 %v387, 110
      %v396 = vpop.permute.xlu0 %395
      %397 = vrot.lane.b32.xlu0 %v388, 110
      %v398 = vpop.permute.xlu0 %397
      %399 = vrot.lane.b32.xlu0 %v389, 110
      %v400 = vpop.permute.xlu0 %399
      %401 = vrot.lane.b32.xlu0 %v390, 110
      %v402 = vpop.permute.xlu0 %401
      %v403 = vrot.slane %v396, 4
      %v404 = vrot.slane %v398, 4
      %v405 = vrot.slane %v400, 4
      %v406 = vrot.slane %v402, 4
      %v407 = vsel %vm234, %v403, %v404
      %vm408 = vcmask 900096
      %v409 = vsel %vm408, %v396, %v407
      %v410 = vsel %vm234, %v405, %v406
      %v411 = vsel %vm408, %v400, %v410
      %414 = vst [vmem:[#allocation2 + $0x50] sm:$0xff] %v409
      %415 = vst [vmem:[#allocation2 + $0x58] sm:$0xff] %v411
      %416 = vrot.lane.b32.xlu0 %v298, 32
      %v417 = vpop.permute.xlu0 %416
      %v418 = vrot.slane %v417, 4
      %vm419 = vcmask 261120
      %v420 = vsel %vm419, %v418, %v417
      %v421 = vunpack.c.l.b16 %v420
      %v422 = vunpack.c.h.b16 %v420
      %v423 = vunpack.c.l.b16 0
      %v424 = vunpack.c.h.b16 0
      %vm425 = vcmp.ne.s32.totalorder %v421, %v423
      %vm426 = vcmp.ne.s32.totalorder %v422, %v424
      %vm427 = vmpackc.low %vm426, %vm425
      %v428 = vunpack.c.l.b16 %v418
      %v429 = vunpack.c.h.b16 %v418
      %v430 = vunpack.c.l.b16 0
      %v431 = vunpack.c.h.b16 0
      %vm432 = vcmp.ne.s32.totalorder %v428, %v430
      %vm433 = vcmp.ne.s32.totalorder %v429, %v431
      %vm434 = vmpackc.low %vm433, %vm432
      %v435 = vsel %vm427, %v205, 0
      %v436 = vsel %vm434, %v206, 0
      %v437 = vsel %vm427, %v207, 0
      %v438 = vsel %vm434, %v208, 0
      %443 = vrot.lane.b32.xlu0 %v435, 96
      %v444 = vpop.permute.xlu0 %443
      %445 = vrot.lane.b32.xlu0 %v436, 96
      %v446 = vpop.permute.xlu0 %445
      %447 = vrot.lane.b32.xlu0 %v437, 96
      %v448 = vpop.permute.xlu0 %447
      %449 = vrot.lane.b32.xlu0 %v438, 96
      %v450 = vpop.permute.xlu0 %449
      %v451 = vrot.slane %v444, 4
      %v452 = vrot.slane %v446, 4
      %v453 = vrot.slane %v448, 4
      %v454 = vrot.slane %v450, 4
      %v455 = vsel %vm234, %v451, %v452
      %vm456 = vcmask 785408
      %v457 = vsel %vm456, %v444, %v455
      %v458 = vsel %vm234, %v453, %v454
      %v459 = vsel %vm456, %v448, %v458
      %462 = vst [vmem:[#allocation2 + $0x60] sm:$0xff] %v457
      %463 = vst [vmem:[#allocation2 + $0x68] sm:$0xff] %v459
      %464 = vrot.lane.b32.xlu0 %v205, 95
      %v465 = vpop.permute.xlu0 %464
      %466 = vrot.lane.b32.xlu0 %v206, 95
      %v467 = vpop.permute.xlu0 %466
      %468 = vrot.lane.b32.xlu0 %v207, 95
      %v469 = vpop.permute.xlu0 %468
      %470 = vrot.lane.b32.xlu0 %v208, 95
      %v471 = vpop.permute.xlu0 %470
      %v472 = vrot.slane %v465, 4
      %v473 = vrot.slane %v467, 4
      %v474 = vrot.slane %v469, 4
      %v475 = vrot.slane %v471, 4
      %v476 = vsel %vm234, %v472, %v473
      %vm477 = vcmask 777216
      %v478 = vsel %vm477, %v465, %v476
      %v479 = vsel %vm234, %v474, %v475
      %v480 = vsel %vm477, %v469, %v479
      %483 = vst [vmem:[#allocation2 + $0x70] sm:$0xff] %v478
      %484 = vst [vmem:[#allocation2 + $0x78] sm:$0xff] %v480
      %485 = vrot.lane.b32.xlu0 %v249, 34
      %v486 = vpop.permute.xlu0 %485
      %v487 = vrot.slane %v486, 4
      %vm488 = vcmask 277504
      %v489 = vsel %vm488, %v487, %v486
      %v490 = vunpack.c.l.b16 %v489
      %v491 = vunpack.c.h.b16 %v489
      %v492 = vunpack.c.l.b16 0
      %v493 = vunpack.c.h.b16 0
      %vm494 = vcmp.ne.s32.totalorder %v490, %v492
      %vm495 = vcmp.ne.s32.totalorder %v491, %v493
      %vm496 = vmpackc.low %vm495, %vm494
      %v497 = vunpack.c.l.b16 %v487
      %v498 = vunpack.c.h.b16 %v487
      %v499 = vunpack.c.l.b16 0
      %v500 = vunpack.c.h.b16 0
      %vm501 = vcmp.ne.s32.totalorder %v497, %v499
      %vm502 = vcmp.ne.s32.totalorder %v498, %v500
      %vm503 = vmpackc.low %vm502, %vm501
      %v504 = vsel %vm496, %v205, 0
      %v505 = vsel %vm503, %v206, 0
      %v506 = vsel %vm496, %v207, 0
      %v507 = vsel %vm503, %v208, 0
      %512 = vrot.lane.b32.xlu0 %v504, 94
      %v513 = vpop.permute.xlu0 %512
      %514 = vrot.lane.b32.xlu0 %v505, 94
      %v515 = vpop.permute.xlu0 %514
      %516 = vrot.lane.b32.xlu0 %v506, 94
      %v517 = vpop.permute.xlu0 %516
      %518 = vrot.lane.b32.xlu0 %v507, 94
      %v519 = vpop.permute.xlu0 %518
      %v520 = vrot.slane %v513, 4
      %v521 = vrot.slane %v515, 4
      %v522 = vrot.slane %v517, 4
      %v523 = vrot.slane %v519, 4
      %v524 = vsel %vm234, %v520, %v521
      %vm525 = vcmask 769024
      %v526 = vsel %vm525, %v513, %v524
      %v527 = vsel %vm234, %v522, %v523
      %v528 = vsel %vm525, %v517, %v527
      %531 = vst [vmem:[#allocation2 + $0x80] sm:$0xff] %v526
      %532 = vst [vmem:[#allocation2 + $0x88] sm:$0xff] %v528
      %v533 = vld [vmem:[%s1] sm:$0xff]
      %v534 = vld [vmem:[#allocation2] sm:$0xff]
      %v535 = vld [vmem:[#allocation2 + $0x8] sm:$0xff]
      %v536 = vld [vmem:[#allocation2 + $0x10] sm:$0xff]
      %v537 = vld [vmem:[#allocation2 + $0x18] sm:$0xff]
      %v538 = vld [vmem:[#allocation2 + $0x20] sm:$0xff]
      %v539 = vld [vmem:[#allocation2 + $0x28] sm:$0xff]
      %v540 = vld [vmem:[#allocation2 + $0x30] sm:$0xff]
      %v541 = vld [vmem:[#allocation2 + $0x38] sm:$0xff]
      %v542 = vld [vmem:[#allocation2 + $0x40] sm:$0xff]
      %v543 = vld [vmem:[#allocation2 + $0x48] sm:$0xff]
      %v544 = vld [vmem:[#allocation2 + $0x50] sm:$0xff]
      %v545 = vld [vmem:[#allocation2 + $0x58] sm:$0xff]
      %v546 = vld [vmem:[#allocation2 + $0x60] sm:$0xff]
      %v547 = vld [vmem:[#allocation2 + $0x68] sm:$0xff]
      %v548 = vld [vmem:[#allocation2 + $0x70] sm:$0xff]
      %v549 = vld [vmem:[#allocation2 + $0x78] sm:$0xff]
      %v550 = vld [vmem:[#allocation2 + $0x80] sm:$0xff]
      %v551 = vld [vmem:[#allocation2 + $0x88] sm:$0xff]
      %v552 = vld [vmem:[%s2] sm:$0xff]
      %554 = vset.pattern.permute.xlu0 0
      %555 = vperm.xlu0 %554, %v552
      %v556 = vpop.permute.xlu0 %555
      %v559 = vunpack.c.l.b16 %v533
      %v560 = vunpack.c.h.b16 %v533
      %v561 = vpack.c.b16 %v559, %v559
      %v562 = vpack.c.b16 %v560, %v560
      %v582 = vunpack.c.l.b16 %v534
      %v583 = vunpack.c.h.b16 %v534
      %v584 = vunpack.c.l.b16 %v535
      %v585 = vunpack.c.h.b16 %v535
      %v586 = vunpack.c.l.b16 %v536
      %v587 = vunpack.c.h.b16 %v536
      %v588 = vunpack.c.l.b16 %v537
      %v589 = vunpack.c.h.b16 %v537
      %v590 = vunpack.c.l.b16 %v538
      %v591 = vunpack.c.h.b16 %v538
      %v592 = vunpack.c.l.b16 %v539
      %v593 = vunpack.c.h.b16 %v539
      %v594 = vunpack.c.l.b16 %v540
      %v595 = vunpack.c.h.b16 %v540
      %v596 = vunpack.c.l.b16 %v541
      %v597 = vunpack.c.h.b16 %v541
      %v598 = vunpack.c.l.b16 %v542
      %v599 = vunpack.c.h.b16 %v542
      %v600 = vunpack.c.l.b16 %v543
      %v601 = vunpack.c.h.b16 %v543
      %v602 = vunpack.c.l.b16 %v544
      %v603 = vunpack.c.h.b16 %v544
      %v604 = vunpack.c.l.b16 %v545
      %v605 = vunpack.c.h.b16 %v545
      %v606 = vunpack.c.l.b16 %v546
      %v607 = vunpack.c.h.b16 %v546
      %v608 = vunpack.c.l.b16 %v547
      %v609 = vunpack.c.h.b16 %v547
      %v610 = vunpack.c.l.b16 %v548
      %v611 = vunpack.c.h.b16 %v548
      %v612 = vunpack.c.l.b16 %v549
      %v613 = vunpack.c.h.b16 %v549
      %v614 = vunpack.c.l.b16 %v550
      %v615 = vunpack.c.h.b16 %v550
      %v616 = vunpack.c.l.b16 %v551
      %v617 = vunpack.c.h.b16 %v551
      %v618 = vpack.c.b16 %v584, %v582
      %v619 = vpack.c.b16 %v585, %v583
      %v620 = vpack.c.b16 %v588, %v586
      %v621 = vpack.c.b16 %v589, %v587
      %v622 = vpack.c.b16 %v592, %v590
      %v623 = vpack.c.b16 %v593, %v591
      %v624 = vpack.c.b16 %v596, %v594
      %v625 = vpack.c.b16 %v597, %v595
      %v626 = vpack.c.b16 %v600, %v598
      %v627 = vpack.c.b16 %v601, %v599
      %v628 = vpack.c.b16 %v604, %v602
      %v629 = vpack.c.b16 %v605, %v603
      %v630 = vpack.c.b16 %v608, %v606
      %v631 = vpack.c.b16 %v609, %v607
      %v632 = vpack.c.b16 %v612, %v610
      %v633 = vpack.c.b16 %v613, %v611
      %v634 = vpack.c.b16 %v616, %v614
      %v635 = vpack.c.b16 %v617, %v615
      %vm654 = vcmask 130048
      %v656 = vsel %vm654, %v562, 0
      %658 = vmatpush.bf16.msra.mxu0 %v632
      %659 = vmatpush.bf16.msra.mxu0 %v630
      %660 = vmatpush.bf16.msra.mxu0 %v628
      %661 = vmatpush.bf16.msra.mxu0 %v626
      %662 = vmatpush.bf16.msra.mxu0 %v624
      %663 = vmatpush.bf16.msra.mxu0 %v622
      %664 = vmatpush.bf16.msra.mxu0 %v620
      %665 = vmatpush.bf16.msra.mxu0 %v618
      %666 = vmatmul.bf16.gmra.mxu0 %v561
      %v667 = vpop.f32.mrf.mxu0
      %v668 = vadd.f32 %v556, %v667
      %v669 = vpop.f32.mrf.mxu0
      %670 = vdwg.mxu0
      %671 = vmatpush.bf16.msra.mxu0 0
      %672 = vmatpush.bf16.msra.mxu0 0
      %673 = vmatpush.bf16.msra.mxu0 0
      %674 = vmatpush.bf16.msra.mxu0 0
      %675 = vmatpush.bf16.msra.mxu0 0
      %676 = vmatpush.bf16.msra.mxu0 0
      %677 = vmatpush.bf16.msra.mxu0 0
      %678 = vmatpush.bf16.msra.mxu0 %v634
      %679 = vmatmul.bf16.gmra.mxu0 %v656
      %v680 = vpop.f32.mrf.mxu0
      %v681 = vadd.f32 %v668, %v680
      %v682 = vpop.f32.mrf.mxu0
      %683 = vdwg.mxu0
      %684 = vmatpush.bf16.msra.mxu0 %v633
      %685 = vmatpush.bf16.msra.mxu0 %v631
      %686 = vmatpush.bf16.msra.mxu0 %v629
      %687 = vmatpush.bf16.msra.mxu0 %v627
      %688 = vmatpush.bf16.msra.mxu0 %v625
      %689 = vmatpush.bf16.msra.mxu0 %v623
      %690 = vmatpush.bf16.msra.mxu0 %v621
      %691 = vmatpush.bf16.msra.mxu0 %v619
      %692 = vmatmul.bf16.gmra.mxu0 %v561
      %v693 = vpop.f32.mrf.mxu0
      %v694 = vadd.f32 %v556, %v693
      %v695 = vpop.f32.mrf.mxu0
      %696 = vdwg.mxu0
      %697 = vmatpush.bf16.msra.mxu0 0
      %698 = vmatpush.bf16.msra.mxu0 0
      %699 = vmatpush.bf16.msra.mxu0 0
      %700 = vmatpush.bf16.msra.mxu0 0
      %701 = vmatpush.bf16.msra.mxu0 0
      %702 = vmatpush.bf16.msra.mxu0 0
      %703 = vmatpush.bf16.msra.mxu0 0
      %704 = vmatpush.bf16.msra.mxu0 %v635
      %705 = vmatmul.bf16.gmra.mxu0 %v656
      %v706 = vpop.f32.mrf.mxu0
      %v707 = vadd.f32 %v694, %v706
      %v708 = vpop.f32.mrf.mxu0
      %709 = vdwg.mxu0
      %710 = vst [vmem:[%s170] sm:$0xff] %v681
      %711 = vst [vmem:[%s170 + $0x8] sm:$0xff] %v707
      %p712 = scmp.lt.s32.totalorder %s14, 1
      %s713 = scalar_select %p712, %s14, 1
      %s714 = smul.addr %s713, 2
      %s715 = smul.addr %s714, 8
      %s716 = scalar_lea.vmem %s3, %s715
      // Predicated region
      $region33: #{cct_forward.1} parent=31 // pred_check
        %p717 = pneg %p100
      $region34: #{cct_forward.1} parent=31 // pred_check_branch
        %719 = sbr.rel (%p717) target = $region36
      $region35: #{cct_forward.1} parent=31 // pred_region
        _
      $region36: #{cct_forward.1} parent=31 // pred_fallthru
        _
    $region32: #{cct_forward.1} parent=5 // pred_fallthru
      _
    %p720 = scmp.le.s32.totalorder 2, %s9
    // Predicated region
    $region37: #{cct_forward.1} parent=5 // pred_check
      %p721 = pneg %p720
    $region38: #{cct_forward.1} parent=5 // pred_check_branch
      %723 = sbr.rel (%p721) target = $region40
    $region39: #{cct_forward.1} parent=5 // pred_region
      %s724 = ssub.s32 %s9, 2
      // Predicated region
      $region41: #{cct_forward.1} parent=39 // pred_check
        %p725 = pneg %p106
      $region42: #{cct_forward.1} parent=39 // pred_check_branch
        %727 = sbr.rel (%p725) target = $region44
      $region43: #{cct_forward.1} parent=39 // pred_region
        %p728 = scmp.lt.s32.totalorder %s15, 1
        %s729 = scalar_select %p728, %s15, 1
        %s730 = smul.addr %s729, 2
        %s731 = smul.addr %s730, 8
        %s732 = scalar_lea.vmem %s3, %s731
      $region44: #{cct_forward.1} parent=39 // pred_fallthru
        _
    $region40: #{cct_forward.1} parent=5 // pred_fallthru
      _
  $region6: #{cct_forward.1} parent=0 // loop_footer
    %s13 = sadd.s32 1, %s9
  $region7: #{cct_forward.1} parent=0 // loop_footer_branch
    %8 = sbr.rel target = $region3
  $region8: #{cct_forward.1} parent=0 // loop_exit
    _

</llo_original>
